<compile_context>
chip_gen: v7x
topology: tpu7x:2x2x1
jax: 0.10.0
libtpu: 0.0.40
codegen_flags: <defaults>
</compile_context>

<pallas_src>
import jax
import jax.numpy as jnp
from jax.experimental import pallas as pl
from jax.experimental.pallas import tpu as pltpu


def _round_up(x, m):
    return (x + m - 1) // m * m


def _mp_kernel(idx0_ref, idx1_ref, e_ref, rw_ref, out_ref):
    """One (node-tile i, edge-tile k) grid step."""
    k = pl.program_id(1)

    @pl.when(k == 0)
    def _():
        out_ref[...] = jnp.zeros_like(out_ref)

    n_pad = rw_ref.shape[0]          # full padded node count (resident slab)
    tn = out_ref.shape[0]            # node tile owned by this program
    te = e_ref.shape[0]              # edge tile

    idx0 = idx0_ref[...]             # [1, TE] int32  (a[:, 0] of this tile)
    idx1 = idx1_ref[...]             # [1, TE] int32  (a[:, 1] of this tile)

    # ---- gather rw[a[:, k]] on the MXU: one-hot over ALL nodes -------------
    rows_all = jax.lax.broadcasted_iota(jnp.int32, (n_pad, te), 0)
    gt0 = (rows_all == idx0).astype(jnp.bfloat16)    # [N_pad, TE]
    gt1 = (rows_all == idx1).astype(jnp.bfloat16)

    rw = rw_ref[...]                                 # [N_pad, F_pad] bf16
    dn = (((0,), (0,)), ((), ()))                    # contract the node axis
    g0 = jax.lax.dot_general(gt0, rw, dn, preferred_element_type=jnp.float32)
    g1 = jax.lax.dot_general(gt1, rw, dn, preferred_element_type=jnp.float32)

    # ---- messages: f32 elementwise, bf16 into the scatter matmul -----------
    ef = e_ref[...]                                  # [TE, F_pad] f32
    m1 = (g0 * ef).astype(jnp.bfloat16)              # rij, scattered by a[:,1]
    m0 = (g1 * ef).astype(jnp.bfloat16)              # rji, scattered by a[:,0]

    # ---- scatter-add into this node tile (accumulate into out_ref) ---------
    if tn == n_pad:                                  # single node tile: reuse
        s0, s1 = gt0, gt1
    else:
        n_off = pl.program_id(0) * tn
        rows_tile = jax.lax.broadcasted_iota(jnp.int32, (tn, te), 0) + n_off
        s0 = (rows_tile == idx0).astype(jnp.bfloat16)
        s1 = (rows_tile == idx1).astype(jnp.bfloat16)

    out_ref[...] += (
        jnp.dot(s1, m1, preferred_element_type=jnp.float32)
        + jnp.dot(s0, m0, preferred_element_type=jnp.float32))


@jax.jit
def message_passing(r, e, a, aggr_wgt=None):
    """Pallas equivalent of MessagePassingModule.forward."""
    N, F = r.shape
    E = e.shape[0]
    assert F == e.shape[-1]

    # r * aggr_wgt fused in XLA; specialized None path (no ones array).
    rw = r if aggr_wgt is None else r * aggr_wgt
    rw = rw.astype(jnp.bfloat16)

    # Lane-dense feature axis, MXU-friendly node/edge tiles (<=256 wide).
    f_pad = _round_up(F, 128)
    tn = min(_round_up(N, 128), 256)
    n_pad = _round_up(N, tn)
    te = min(_round_up(E, 128), 256)
    e_pad = _round_up(E, te)
    n_tiles = n_pad // tn
    e_tiles = e_pad // te

    rw_p = jnp.pad(rw, ((0, n_pad - N), (0, f_pad - F)))
    e_p = jnp.pad(e.astype(jnp.float32), ((0, e_pad - E), (0, f_pad - F)))
    # Padded edges get index -1: they match no node row and contribute nothing.
    idx = jnp.pad(a.astype(jnp.int32).T, ((0, 0), (0, e_pad - E)),
                  constant_values=-1)
    idx0 = idx[0:1]                                   # [1, E_pad], lane dense
    idx1 = idx[1:2]

    # MXU work: 2 full-N gather matmuls + 2 node-tile scatter matmuls per step.
    flops = 4 * e_pad * f_pad * n_pad * (n_tiles + 1)
    bytes_accessed = (rw_p.size * 2 + n_tiles * e_p.size * 4
                      + n_tiles * idx.size * 4 + n_pad * f_pad * 4)

    # Explicit VMEM budget: resident rw + accumulator + double-buffered tiles
    # + one-hot / message temporaries, with 2x headroom (fits v7x's 64 MiB).
    vmem_est = (2 * n_pad * f_pad * 2            # rw slab (bf16)
                + 2 * tn * f_pad * 4             # out accumulator block
                + 2 * te * f_pad * 4             # edge-feature tile
                + 4 * te * 4                     # index tiles
                + 4 * n_pad * te * 2             # gather/scatter one-hots
                + 4 * te * f_pad * 4)            # g0/g1/m0/m1 temporaries
    vmem_limit = int(min(max(2 * vmem_est, 16 * 1024 * 1024),
                         60 * 1024 * 1024))

    out = pl.pallas_call(
        _mp_kernel,
        out_shape=jax.ShapeDtypeStruct((n_pad, f_pad), jnp.float32),
        grid=(n_tiles, e_tiles),
        in_specs=[
            pl.BlockSpec((1, te), lambda i, k: (0, k)),         # idx0
            pl.BlockSpec((1, te), lambda i, k: (0, k)),         # idx1
            pl.BlockSpec((te, f_pad), lambda i, k: (k, 0)),     # edge features
            pl.BlockSpec((n_pad, f_pad), lambda i, k: (0, 0)),  # rw (resident)
        ],
        out_specs=pl.BlockSpec((tn, f_pad), lambda i, k: (i, 0)),
        compiler_params=pltpu.CompilerParams(
            dimension_semantics=("parallel", "arbitrary"),
            vmem_limit_bytes=vmem_limit),
        cost_estimate=pl.CostEstimate(
            flops=flops, transcendentals=0, bytes_accessed=bytes_accessed),
    )(idx0, idx1, e_p, rw_p)

    return out[:N, :F].astype(r.dtype)


def _reference(r, e, a, aggr_wgt=None):
    """Pure-JAX reference (mirrors the PyTorch module exactly, f32)."""
    N = r.shape[0]
    if aggr_wgt is not None:
        r = r * aggr_wgt
    rij = r[a[:, 0]] * e
    rji = r[a[:, 1]] * e
    out = jax.ops.segment_sum(rij, a[:, 1], num_segments=N)
    out = out + jax.ops.segment_sum(rji, a[:, 0], num_segments=N)
    return out


if __name__ == "__main__":
    key = jax.random.PRNGKey(0)
    k_r, k_e, k_a, k_w = jax.random.split(key, 4)

    N, F, E = 16, 32, 48                          # nodes, features, edges
    r = jax.random.normal(k_r, (N, F), dtype=jnp.float32)
    e = jax.random.normal(k_e, (E, F), dtype=jnp.float32)
    a = jax.random.randint(k_a, (E, 2), 0, N, dtype=jnp.int32)
    aggr_wgt = jax.random.normal(k_w, (N, F), dtype=jnp.float32)

    # bf16 MXU operands => tolerance ~1e-2 relative vs the f32 reference.
    out = jax.block_until_ready(message_passing(r, e, a, aggr_wgt))
    ref = _reference(r, e, a, aggr_wgt)
    assert out.shape == (N, F)
    assert jnp.allclose(out, ref, atol=1e-1, rtol=5e-2), (
        float(jnp.max(jnp.abs(out - ref))))

    # aggr_wgt=None path (specialized: no ones array is ever materialized).
    out2 = jax.block_until_ready(message_passing(r, e, a, None))
    ref2 = _reference(r, e, a, None)
    assert jnp.allclose(out2, ref2, atol=1e-1, rtol=5e-2), (
        float(jnp.max(jnp.abs(out2 - ref2))))

    print("KERNEL_OK")
</pallas_src>

<mosaic_0001>
module attributes {stable_mosaic.version = 11 : i64} {
  func.func @_mp_kernel(%arg0: i32, %arg1: i32, %arg2: memref<1x128xi32, #tpu.memory_space<vmem>>, %arg3: memref<1x128xi32, #tpu.memory_space<vmem>>, %arg4: memref<128x128xf32, #tpu.memory_space<vmem>>, %arg5: memref<128x128xbf16, #tpu.memory_space<vmem>>, %arg6: memref<128x128xf32, #tpu.memory_space<vmem>>) attributes {dimension_semantics = [#tpu.dimension_semantics<parallel>, #tpu.dimension_semantics<arbitrary>], iteration_bounds = array<i64: 1, 1>, scalar_prefetch = 0 : i64, scratch_operands = 0 : i64, tpu.core_type = #tpu.core_type<tc>, window_params = [{transform_indices = @transform_0, window_bounds = array<i64: 1, 128>}, {transform_indices = @transform_1, window_bounds = array<i64: 1, 128>}, {transform_indices = @transform_2, window_bounds = array<i64: 128, 128>}, {pipeline_mode = #tpu.pipeline_mode<synchronous>, transform_indices = @transform_3, window_bounds = array<i64: 128, 128>}, {transform_indices = @transform_4, window_bounds = array<i64: 128, 128>}]} {
    %c0_i32 = arith.constant 0 : i32
    %0 = arith.cmpi eq, %arg1, %c0_i32 : i32
    %1 = arith.extui %0 : i1 to i32
    %c0_i32_0 = arith.constant 0 : i32
    %2 = arith.cmpi ne, %1, %c0_i32_0 : i32
    scf.if %2 {
      %cst_15 = arith.constant 0.000000e+00 : f32
      %30 = vector.broadcast %cst_15 : f32 to vector<128x128xf32>
      %c0_16 = arith.constant 0 : index
      %c0_17 = arith.constant 0 : index
      %31 = vector.load %arg6[%c0_16, %c0_17] : memref<128x128xf32, #tpu.memory_space<vmem>>, vector<128x128xf32>
      tpu.vector_store %arg6[%c0_16, %c0_17], %30 {strides = array<i32>} : memref<128x128xf32, #tpu.memory_space<vmem>>, vector<128x128xf32>,
    } else {
    }
    %c0 = arith.constant 0 : index
    %c0_1 = arith.constant 0 : index
    %3 = vector.load %arg2[%c0, %c0_1] : memref<1x128xi32, #tpu.memory_space<vmem>>, vector<1x128xi32>
    %c0_2 = arith.constant 0 : index
    %c0_3 = arith.constant 0 : index
    %4 = vector.load %arg3[%c0_2, %c0_3] : memref<1x128xi32, #tpu.memory_space<vmem>>, vector<1x128xi32>
    %5 = tpu.iota {dimensions = array<i32: 0>} : vector<128x128xi32>
    %6 = vector.broadcast %3 : vector<1x128xi32> to vector<128x128xi32>
    %7 = arith.cmpi eq, %5, %6 : vector<128x128xi32>
    %8 = arith.extui %7 : vector<128x128xi1> to vector<128x128xi32>
    %9 = arith.sitofp %8 : vector<128x128xi32> to vector<128x128xf32>
    %10 = arith.truncf %9 : vector<128x128xf32> to vector<128x128xbf16>
    %11 = vector.broadcast %4 : vector<1x128xi32> to vector<128x128xi32>
    %12 = arith.cmpi eq, %5, %11 : vector<128x128xi32>
    %13 = arith.extui %12 : vector<128x128xi1> to vector<128x128xi32>
    %14 = arith.sitofp %13 : vector<128x128xi32> to vector<128x128xf32>
    %15 = arith.truncf %14 : vector<128x128xf32> to vector<128x128xbf16>
    %c0_4 = arith.constant 0 : index
    %c0_5 = arith.constant 0 : index
    %16 = vector.load %arg5[%c0_4, %c0_5] : memref<128x128xbf16, #tpu.memory_space<vmem>>, vector<128x128xbf16>
    %cst = arith.constant dense<0.000000e+00> : vector<128x128xf32>
    %17 = tpu.matmul %10, %16, %cst {dimension_numbers = #tpu.dot_dimension_numbers<[0], [0], [1], [1], [0, 1, 1, 1], [], []>} : vector<128x128xbf16>, vector<128x128xbf16>, vector<128x128xf32> -> vector<128x128xf32>
    %cst_6 = arith.constant dense<0.000000e+00> : vector<128x128xf32>
    %18 = tpu.matmul %15, %16, %cst_6 {dimension_numbers = #tpu.dot_dimension_numbers<[0], [0], [1], [1], [0, 1, 1, 1], [], []>} : vector<128x128xbf16>, vector<128x128xbf16>, vector<128x128xf32> -> vector<128x128xf32>
    %c0_7 = arith.constant 0 : index
    %c0_8 = arith.constant 0 : index
    %19 = vector.load %arg4[%c0_7, %c0_8] : memref<128x128xf32, #tpu.memory_space<vmem>>, vector<128x128xf32>
    %20 = arith.mulf %17, %19 : vector<128x128xf32>
    %21 = arith.truncf %20 : vector<128x128xf32> to vector<128x128xbf16>
    %22 = arith.mulf %18, %19 : vector<128x128xf32>
    %23 = arith.truncf %22 : vector<128x128xf32> to vector<128x128xbf16>
    %c0_9 = arith.constant 0 : index
    %c0_10 = arith.constant 0 : index
    %24 = vector.load %arg6[%c0_9, %c0_10] : memref<128x128xf32, #tpu.memory_space<vmem>>, vector<128x128xf32>
    %cst_11 = arith.constant dense<0.000000e+00> : vector<128x128xf32>
    %25 = tpu.matmul %15, %21, %cst_11 {dimension_numbers = #tpu.dot_dimension_numbers<[1], [0], [0], [1], [0, 0, 1, 1], [], []>} : vector<128x128xbf16>, vector<128x128xbf16>, vector<128x128xf32> -> vector<128x128xf32>
    %cst_12 = arith.constant dense<0.000000e+00> : vector<128x128xf32>
    %26 = tpu.matmul %10, %23, %cst_12 {dimension_numbers = #tpu.dot_dimension_numbers<[1], [0], [0], [1], [0, 0, 1, 1], [], []>} : vector<128x128xbf16>, vector<128x128xbf16>, vector<128x128xf32> -> vector<128x128xf32>
    %27 = arith.addf %25, %26 : vector<128x128xf32>
    %28 = arith.addf %24, %27 : vector<128x128xf32>
    %c0_13 = arith.constant 0 : index
    %c0_14 = arith.constant 0 : index
    %29 = vector.load %arg6[%c0_13, %c0_14] : memref<128x128xf32, #tpu.memory_space<vmem>>, vector<128x128xf32>
    tpu.vector_store %arg6[%c0_13, %c0_14], %28 {strides = array<i32>} : memref<128x128xf32, #tpu.memory_space<vmem>>, vector<128x128xf32>,
    return
  }
  func.func @transform_0(%arg0: i32, %arg1: i32) -> (i32, i32) {
    %c0_i32 = arith.constant 0 : i32
    %c0_i32_0 = arith.constant 0 : i32
    return %c0_i32, %arg1 : i32, i32
  }
  func.func @transform_1(%arg0: i32, %arg1: i32) -> (i32, i32) {
    %c0_i32 = arith.constant 0 : i32
    %c0_i32_0 = arith.constant 0 : i32
    return %c0_i32, %arg1 : i32, i32
  }
  func.func @transform_2(%arg0: i32, %arg1: i32) -> (i32, i32) {
    %c0_i32 = arith.constant 0 : i32
    %c0_i32_0 = arith.constant 0 : i32
    return %arg1, %c0_i32 : i32, i32
  }
  func.func @transform_3(%arg0: i32, %arg1: i32) -> (i32, i32) {
    %c0_i32 = arith.constant 0 : i32
    %c0_i32_0 = arith.constant 0 : i32
    %c0_i32_1 = arith.constant 0 : i32
    return %c0_i32, %c0_i32_0 : i32, i32
  }
  func.func @transform_4(%arg0: i32, %arg1: i32) -> (i32, i32) {
    %c0_i32 = arith.constant 0 : i32
    %c0_i32_0 = arith.constant 0 : i32
    return %arg0, %c0_i32 : i32, i32
  }
}

</mosaic_0001>

<llo_original>
// kernel: message_passing.1
$region0: #{message_passing.1}
  #allocation0 [shape = 'u32[]', space=smem, size = 0x4, offset = 0x4, fixed_abs, tag = 'smem constant byte address 0x4 - core index']
  #allocation1 [shape = 'u32[144,128]{1,0:T(1,128)}', space=vmem, size = 0x12000, scoped, tag = 'internal scratch']
  %s0 = inlined_call_operand.vmem [shape: s32[1,128], index: 0, kind: input, shape index: {}]
  %s1 = inlined_call_operand.vmem [shape: s32[1,128], index: 1, kind: input, shape index: {}]
  %s2 = inlined_call_operand.vmem [shape: f32[128,128], index: 2, kind: input, shape index: {}]
  %s3 = inlined_call_operand.vmem [shape: bf16[128,128], index: 3, kind: input, shape index: {}]
  %s4 = inlined_call_operand.vmem [shape: f32[128,128], index: 4, kind: output, shape index: {}]
  %s5 = sld [smem:[#allocation0]]
  $region30: #{message_passing.1} parent=0
    _
  %s7 = ssub.s32 1, %s5
  %s8 = scalar_select 0, %s7, %s5
  // Predicated region
  $region2: #{message_passing.1} parent=0 // pred_check
    _
  $region3: #{message_passing.1} parent=0 // pred_check_branch
    %10 = sbr.rel (0) target = $region5
  $region4: #{message_passing.1} parent=0 // pred_region
    _
  $region5: #{message_passing.1} parent=0 // pred_fallthru
    _
  // Predicated region
  $region6: #{message_passing.1} parent=0 // pred_check
    _
  $region7: #{message_passing.1} parent=0 // pred_check_branch
    %12 = sbr.rel (0) target = $region9
  $region8: #{message_passing.1} parent=0 // pred_region
    _
  $region9: #{message_passing.1} parent=0 // pred_fallthru
    _
  // Predicated region
  $region10: #{message_passing.1} parent=0 // pred_check
    _
  $region11: #{message_passing.1} parent=0 // pred_check_branch
    %14 = sbr.rel (0) target = $region13
  $region12: #{message_passing.1} parent=0 // pred_region
    _
  $region13: #{message_passing.1} parent=0 // pred_fallthru
    _
  // Predicated region
  $region14: #{message_passing.1} parent=0 // pred_check
    _
  $region15: #{message_passing.1} parent=0 // pred_check_branch
    %16 = sbr.rel (0) target = $region17
  $region16: #{message_passing.1} parent=0 // pred_region
    _
  $region17: #{message_passing.1} parent=0 // pred_fallthru
    _
  %p18 = scmp.eq.s32.totalorder 0, 0
  // Predicated region
  $region18: #{message_passing.1} parent=0 // pred_check
    %p19 = pneg %p18
  $region19: #{message_passing.1} parent=0 // pred_check_branch
    %21 = sbr.rel (%p19) target = $region21
  $region20: #{message_passing.1} parent=0 // pred_region
    %22 = vst [vmem:[%s4] sm:$0xff] 0.0
    %23 = vst [vmem:[%s4 + $0x8] sm:$0xff] 0.0
    %24 = vst [vmem:[%s4 + $0x10] sm:$0xff] 0.0
    %25 = vst [vmem:[%s4 + $0x18] sm:$0xff] 0.0
    %26 = vst [vmem:[%s4 + $0x20] sm:$0xff] 0.0
    %27 = vst [vmem:[%s4 + $0x28] sm:$0xff] 0.0
    %28 = vst [vmem:[%s4 + $0x30] sm:$0xff] 0.0
    %29 = vst [vmem:[%s4 + $0x38] sm:$0xff] 0.0
    %30 = vst [vmem:[%s4 + $0x40] sm:$0xff] 0.0
    %31 = vst [vmem:[%s4 + $0x48] sm:$0xff] 0.0
    %32 = vst [vmem:[%s4 + $0x50] sm:$0xff] 0.0
    %33 = vst [vmem:[%s4 + $0x58] sm:$0xff] 0.0
    %34 = vst [vmem:[%s4 + $0x60] sm:$0xff] 0.0
    %35 = vst [vmem:[%s4 + $0x68] sm:$0xff] 0.0
    %36 = vst [vmem:[%s4 + $0x70] sm:$0xff] 0.0
    %37 = vst [vmem:[%s4 + $0x78] sm:$0xff] 0.0
  $region21: #{message_passing.1} parent=0 // pred_fallthru
    _
  %v38 = vld [vmem:[%s0] sm:$0x1]
  %v39 = vld [vmem:[%s1] sm:$0x1]
  %v40 = vlaneseq
  %v41 = vshrl.u32 %v40, 7
  %v42 = vadd.s32 %v41, 8
  %v43 = vadd.s32 %v41, 16
  %v44 = vadd.s32 %v41, 24
  %v45 = vadd.s32 %v41, 32
  %v46 = vadd.s32 %v41, 40
  %v47 = vadd.s32 %v41, 48
  %v48 = vadd.s32 %v41, 56
  %v49 = vadd.s32 %v41, 64
  %v50 = vadd.s32 %v41, 72
  %v51 = vadd.s32 %v41, 80
  %v52 = vadd.s32 %v41, 88
  %v53 = vadd.s32 %v41, 96
  %v54 = vadd.s32 %v41, 104
  %v55 = vadd.s32 %v41, 112
  %v56 = vadd.s32 %v41, 120
  %v57 = vlaneseq
  %v58 = vshrl.u32 %v57, 7
  %v59 = vsub.s32 0, %v58
  %v60 = vrot.slane %v38, %v59
  %vm61 = vcmp.eq.s32.totalorder %v41, %v60
  %vm62 = vcmp.eq.s32.totalorder %v42, %v60
  %vm63 = vcmp.eq.s32.totalorder %v43, %v60
  %vm64 = vcmp.eq.s32.totalorder %v44, %v60
  %vm65 = vcmp.eq.s32.totalorder %v45, %v60
  %vm66 = vcmp.eq.s32.totalorder %v46, %v60
  %vm67 = vcmp.eq.s32.totalorder %v47, %v60
  %vm68 = vcmp.eq.s32.totalorder %v48, %v60
  %vm69 = vcmp.eq.s32.totalorder %v49, %v60
  %vm70 = vcmp.eq.s32.totalorder %v50, %v60
  %vm71 = vcmp.eq.s32.totalorder %v51, %v60
  %vm72 = vcmp.eq.s32.totalorder %v52, %v60
  %vm73 = vcmp.eq.s32.totalorder %v53, %v60
  %vm74 = vcmp.eq.s32.totalorder %v54, %v60
  %vm75 = vcmp.eq.s32.totalorder %v55, %v60
  %vm76 = vcmp.eq.s32.totalorder %v56, %v60
  %v77 = vsel %vm61, 1, 0
  %v78 = vsel %vm62, 1, 0
  %v79 = vsel %vm63, 1, 0
  %v80 = vsel %vm64, 1, 0
  %v81 = vsel %vm65, 1, 0
  %v82 = vsel %vm66, 1, 0
  %v83 = vsel %vm67, 1, 0
  %v84 = vsel %vm68, 1, 0
  %v85 = vsel %vm69, 1, 0
  %v86 = vsel %vm70, 1, 0
  %v87 = vsel %vm71, 1, 0
  %v88 = vsel %vm72, 1, 0
  %v89 = vsel %vm73, 1, 0
  %v90 = vsel %vm74, 1, 0
  %v91 = vsel %vm75, 1, 0
  %v92 = vsel %vm76, 1, 0
  %v93 = vcvt.s32.f32 %v77
  %v94 = vcvt.s32.f32 %v78
  %v95 = vcvt.s32.f32 %v79
  %v96 = vcvt.s32.f32 %v80
  %v97 = vcvt.s32.f32 %v81
  %v98 = vcvt.s32.f32 %v82
  %v99 = vcvt.s32.f32 %v83
  %v100 = vcvt.s32.f32 %v84
  %v101 = vcvt.s32.f32 %v85
  %v102 = vcvt.s32.f32 %v86
  %v103 = vcvt.s32.f32 %v87
  %v104 = vcvt.s32.f32 %v88
  %v105 = vcvt.s32.f32 %v89
  %v106 = vcvt.s32.f32 %v90
  %v107 = vcvt.s32.f32 %v91
  %v108 = vcvt.s32.f32 %v92
  %v109 = vpack.c.bf16 %v94, %v93
  %v110 = vpack.c.bf16 %v96, %v95
  %v111 = vpack.c.bf16 %v98, %v97
  %v112 = vpack.c.bf16 %v100, %v99
  %v113 = vpack.c.bf16 %v102, %v101
  %v114 = vpack.c.bf16 %v104, %v103
  %v115 = vpack.c.bf16 %v106, %v105
  %v116 = vpack.c.bf16 %v108, %v107
  %v117 = vlaneseq
  %v118 = vshrl.u32 %v117, 7
  %v119 = vsub.s32 0, %v118
  %v120 = vrot.slane %v39, %v119
  %vm121 = vcmp.eq.s32.totalorder %v41, %v120
  %vm122 = vcmp.eq.s32.totalorder %v42, %v120
  %vm123 = vcmp.eq.s32.totalorder %v43, %v120
  %vm124 = vcmp.eq.s32.totalorder %v44, %v120
  %vm125 = vcmp.eq.s32.totalorder %v45, %v120
  %vm126 = vcmp.eq.s32.totalorder %v46, %v120
  %vm127 = vcmp.eq.s32.totalorder %v47, %v120
  %vm128 = vcmp.eq.s32.totalorder %v48, %v120
  %vm129 = vcmp.eq.s32.totalorder %v49, %v120
  %vm130 = vcmp.eq.s32.totalorder %v50, %v120
  %vm131 = vcmp.eq.s32.totalorder %v51, %v120
  %vm132 = vcmp.eq.s32.totalorder %v52, %v120
  %vm133 = vcmp.eq.s32.totalorder %v53, %v120
  %vm134 = vcmp.eq.s32.totalorder %v54, %v120
  %vm135 = vcmp.eq.s32.totalorder %v55, %v120
  %vm136 = vcmp.eq.s32.totalorder %v56, %v120
  %v137 = vsel %vm121, 1, 0
  %v138 = vsel %vm122, 1, 0
  %v139 = vsel %vm123, 1, 0
  %v140 = vsel %vm124, 1, 0
  %v141 = vsel %vm125, 1, 0
  %v142 = vsel %vm126, 1, 0
  %v143 = vsel %vm127, 1, 0
  %v144 = vsel %vm128, 1, 0
  %v145 = vsel %vm129, 1, 0
  %v146 = vsel %vm130, 1, 0
  %v147 = vsel %vm131, 1, 0
  %v148 = vsel %vm132, 1, 0
  %v149 = vsel %vm133, 1, 0
  %v150 = vsel %vm134, 1, 0
  %v151 = vsel %vm135, 1, 0
  %v152 = vsel %vm136, 1, 0
  %v153 = vcvt.s32.f32 %v137
  %v154 = vcvt.s32.f32 %v138
  %v155 = vcvt.s32.f32 %v139
  %v156 = vcvt.s32.f32 %v140
  %v157 = vcvt.s32.f32 %v141
  %v158 = vcvt.s32.f32 %v142
  %v159 = vcvt.s32.f32 %v143
  %v160 = vcvt.s32.f32 %v144
  %v161 = vcvt.s32.f32 %v145
  %v162 = vcvt.s32.f32 %v146
  %v163 = vcvt.s32.f32 %v147
  %v164 = vcvt.s32.f32 %v148
  %v165 = vcvt.s32.f32 %v149
  %v166 = vcvt.s32.f32 %v150
  %v167 = vcvt.s32.f32 %v151
  %v168 = vcvt.s32.f32 %v152
  %v169 = vpack.c.bf16 %v154, %v153
  %v170 = vpack.c.bf16 %v156, %v155
  %v171 = vpack.c.bf16 %v158, %v157
  %v172 = vpack.c.bf16 %v160, %v159
  %v173 = vpack.c.bf16 %v162, %v161
  %v174 = vpack.c.bf16 %v164, %v163
  %v175 = vpack.c.bf16 %v166, %v165
  %v176 = vpack.c.bf16 %v168, %v167
  %v177 = vld [vmem:[%s3] sm:$0xf]
  %v178 = vld [vmem:[%s3 + $0x4] sm:$0xf]
  %v179 = vld [vmem:[%s3 + $0x8] sm:$0xf]
  %v180 = vld [vmem:[%s3 + $0xc] sm:$0xf]
  %v181 = vld [vmem:[%s3 + $0x10] sm:$0xf]
  %v182 = vld [vmem:[%s3 + $0x14] sm:$0xf]
  %v183 = vld [vmem:[%s3 + $0x18] sm:$0xf]
  %v184 = vld [vmem:[%s3 + $0x1c] sm:$0xf]
  %v185 = vld [vmem:[%s3 + $0x20] sm:$0xf]
  %v186 = vld [vmem:[%s3 + $0x24] sm:$0xf]
  %v187 = vld [vmem:[%s3 + $0x28] sm:$0xf]
  %v188 = vld [vmem:[%s3 + $0x2c] sm:$0xf]
  %v189 = vld [vmem:[%s3 + $0x30] sm:$0xf]
  %v190 = vld [vmem:[%s3 + $0x34] sm:$0xf]
  %v191 = vld [vmem:[%s3 + $0x38] sm:$0xf]
  %v192 = vld [vmem:[%s3 + $0x3c] sm:$0xf]
  %193 = vxpose.xlu0.c.b16.start [1/8] %v109, 128
  %194 = vxpose.xlu0.c.b16.cont [2/8] %v110, 128
  %195 = vxpose.xlu0.c.b16.cont [3/8] %v111, 128
  %196 = vxpose.xlu0.c.b16.cont [4/8] %v112, 128
  %197 = vxpose.xlu0.c.b16.cont [5/8] %v113, 128
  %198 = vxpose.xlu0.c.b16.cont [6/8] %v114, 128
  %199 = vxpose.xlu0.c.b16.cont [7/8] %v115, 128
  %200 = vxpose.xlu0.c.b16.end [8/8] %v116, 128
  %v201 = vpop.trf.xlu0
  %v202 = vpop.trf.xlu0
  %v203 = vpop.trf.xlu0
  %v204 = vpop.trf.xlu0
  %v205 = vpop.trf.xlu0
  %v206 = vpop.trf.xlu0
  %v207 = vpop.trf.xlu0
  %v208 = vpop.trf.xlu0
  %v225 = vunpack.c.l.b16 %v177
  %v226 = vunpack.c.l.b16 %v178
  %v227 = vunpack.c.l.b16 %v179
  %v228 = vunpack.c.l.b16 %v180
  %v229 = vunpack.c.l.b16 %v181
  %v230 = vunpack.c.l.b16 %v182
  %v231 = vunpack.c.l.b16 %v183
  %v232 = vunpack.c.l.b16 %v184
  %v233 = vunpack.c.l.b16 %v185
  %v234 = vunpack.c.l.b16 %v186
  %v235 = vunpack.c.l.b16 %v187
  %v236 = vunpack.c.l.b16 %v188
  %v237 = vunpack.c.l.b16 %v189
  %v238 = vunpack.c.l.b16 %v190
  %v239 = vunpack.c.l.b16 %v191
  %v240 = vunpack.c.l.b16 %v192
  %v241 = vpack.c.b16 %v226, %v225
  %v242 = vpack.c.b16 %v228, %v227
  %v243 = vpack.c.b16 %v230, %v229
  %v244 = vpack.c.b16 %v232, %v231
  %v245 = vpack.c.b16 %v234, %v233
  %v246 = vpack.c.b16 %v236, %v235
  %v247 = vpack.c.b16 %v238, %v237
  %v248 = vpack.c.b16 %v240, %v239
  %257 = vmatprep.subr.bf16.mxu0 0
  %258 = vmatpush1.bf16.msra.mxu0 %v241
  %259 = vmatprep.subr.bf16.mxu0 0
  %260 = vmatpush1.bf16.msra.mxu0 %v242
  %261 = vmatprep.subr.bf16.mxu0 0
  %262 = vmatpush1.bf16.msra.mxu0 %v243
  %263 = vmatprep.subr.bf16.mxu0 0
  %264 = vmatpush1.bf16.msra.mxu0 %v244
  %265 = vmatprep.subr.bf16.mxu0 0
  %266 = vmatpush1.bf16.msra.mxu0 %v245
  %267 = vmatprep.subr.bf16.mxu0 0
  %268 = vmatpush1.bf16.msra.mxu0 %v246
  %269 = vmatprep.subr.bf16.mxu0 0
  %270 = vmatpush1.bf16.msra.mxu0 %v247
  %271 = vmatprep.subr.bf16.mxu0 0
  %272 = vmatpush1.bf16.msra.mxu0 %v248
  %273 = vmatprep.subr.bf16.mxu0 0
  %274 = vmatpush1.bf16.msra.mxu0 0
  %275 = vmatprep.subr.bf16.mxu0 0
  %276 = vmatpush1.bf16.msra.mxu0 0
  %277 = vmatprep.subr.bf16.mxu0 0
  %278 = vmatpush1.bf16.msra.mxu0 0
  %279 = vmatprep.subr.bf16.mxu0 0
  %280 = vmatpush1.bf16.msra.mxu0 0
  %281 = vmatprep.subr.bf16.mxu0 0
  %282 = vmatpush1.bf16.msra.mxu0 0
  %283 = vmatprep.subr.bf16.mxu0 0
  %284 = vmatpush1.bf16.msra.mxu0 0
  %285 = vmatprep.subr.bf16.mxu0 0
  %286 = vmatpush1.bf16.msra.mxu0 0
  %287 = vmatprep.subr.bf16.mxu0 0
  %288 = vmatpush1.bf16.msra.mxu0 0
  %289 = vmatprep.mubr.bf16.mxu0 0
  %290 = vmatmul.mubr.bf16.gmra.mrb[0].mxu0 %v201
  %v291 = vpop.f32.mrb[0].mxu0
  %v292 = vadd.f32 0.0, %v291
  %v293 = vpop.f32.mrb[0].mxu0
  %v294 = vpop.f32.mrb[0].mxu0
  %v295 = vadd.f32 0.0, %v294
  %v296 = vpop.f32.mrb[0].mxu0
  %297 = vmatprep.mubr.bf16.mxu0 0
  %298 = vmatmul.mubr.bf16.gmra.mrb[0].mxu0 %v202
  %v299 = vpop.f32.mrb[0].mxu0
  %v300 = vadd.f32 0.0, %v299
  %v301 = vpop.f32.mrb[0].mxu0
  %v302 = vpop.f32.mrb[0].mxu0
  %v303 = vadd.f32 0.0, %v302
  %v304 = vpop.f32.mrb[0].mxu0
  %305 = vmatprep.mubr.bf16.mxu0 0
  %306 = vmatmul.mubr.bf16.gmra.mrb[0].mxu0 %v203
  %v307 = vpop.f32.mrb[0].mxu0
  %v308 = vadd.f32 0.0, %v307
  %v309 = vpop.f32.mrb[0].mxu0
  %v310 = vpop.f32.mrb[0].mxu0
  %v311 = vadd.f32 0.0, %v310
  %v312 = vpop.f32.mrb[0].mxu0
  %313 = vmatprep.mubr.bf16.mxu0 0
  %314 = vmatmul.mubr.bf16.gmra.mrb[0].mxu0 %v204
  %v315 = vpop.f32.mrb[0].mxu0
  %v316 = vadd.f32 0.0, %v315
  %v317 = vpop.f32.mrb[0].mxu0
  %v318 = vpop.f32.mrb[0].mxu0
  %v319 = vadd.f32 0.0, %v318
  %v320 = vpop.f32.mrb[0].mxu0
  %321 = vmatprep.mubr.bf16.mxu0 0
  %322 = vmatmul.mubr.bf16.gmra.mrb[0].mxu0 %v205
  %v323 = vpop.f32.mrb[0].mxu0
  %v324 = vadd.f32 0.0, %v323
  %v325 = vpop.f32.mrb[0].mxu0
  %v326 = vpop.f32.mrb[0].mxu0
  %v327 = vadd.f32 0.0, %v326
  %v328 = vpop.f32.mrb[0].mxu0
  %329 = vmatprep.mubr.bf16.mxu0 0
  %330 = vmatmul.mubr.bf16.gmra.mrb[0].mxu0 %v206
  %v331 = vpop.f32.mrb[0].mxu0
  %v332 = vadd.f32 0.0, %v331
  %v333 = vpop.f32.mrb[0].mxu0
  %v334 = vpop.f32.mrb[0].mxu0
  %v335 = vadd.f32 0.0, %v334
  %v336 = vpop.f32.mrb[0].mxu0
  %337 = vmatprep.mubr.bf16.mxu0 0
  %338 = vmatmul.mubr.bf16.gmra.mrb[0].mxu0 %v207
  %v339 = vpop.f32.mrb[0].mxu0
  %v340 = vadd.f32 0.0, %v339
  %v341 = vpop.f32.mrb[0].mxu0
  %v342 = vpop.f32.mrb[0].mxu0
  %v343 = vadd.f32 0.0, %v342
  %v344 = vpop.f32.mrb[0].mxu0
  %345 = vmatprep.mubr.bf16.mxu0 0
  %346 = vmatmul.mubr.bf16.gmra.mrb[0].mxu0 %v208
  %v347 = vpop.f32.mrb[0].mxu0
  %v348 = vadd.f32 0.0, %v347
  %v349 = vpop.f32.mrb[0].mxu0
  %v350 = vpop.f32.mrb[0].mxu0
  %v351 = vadd.f32 0.0, %v350
  %v352 = vpop.f32.mrb[0].mxu0
  %353 = vdwg.mxu0
  %354 = vxpose.xlu0.c.b16.start [1/8] %v169, 128
  %355 = vxpose.xlu0.c.b16.cont [2/8] %v170, 128
  %356 = vxpose.xlu0.c.b16.cont [3/8] %v171, 128
  %357 = vxpose.xlu0.c.b16.cont [4/8] %v172, 128
  %358 = vxpose.xlu0.c.b16.cont [5/8] %v173, 128
  %359 = vxpose.xlu0.c.b16.cont [6/8] %v174, 128
  %360 = vxpose.xlu0.c.b16.cont [7/8] %v175, 128
  %361 = vxpose.xlu0.c.b16.end [8/8] %v176, 128
  %v362 = vpop.trf.xlu0
  %v363 = vpop.trf.xlu0
  %v364 = vpop.trf.xlu0
  %v365 = vpop.trf.xlu0
  %v366 = vpop.trf.xlu0
  %v367 = vpop.trf.xlu0
  %v368 = vpop.trf.xlu0
  %v369 = vpop.trf.xlu0
  %370 = vmatprep.subr.bf16.mxu0 0
  %371 = vmatpush1.bf16.msra.mxu0 %v241
  %372 = vmatprep.subr.bf16.mxu0 0
  %373 = vmatpush1.bf16.msra.mxu0 %v242
  %374 = vmatprep.subr.bf16.mxu0 0
  %375 = vmatpush1.bf16.msra.mxu0 %v243
  %376 = vmatprep.subr.bf16.mxu0 0
  %377 = vmatpush1.bf16.msra.mxu0 %v244
  %378 = vmatprep.subr.bf16.mxu0 0
  %379 = vmatpush1.bf16.msra.mxu0 %v245
  %380 = vmatprep.subr.bf16.mxu0 0
  %381 = vmatpush1.bf16.msra.mxu0 %v246
  %382 = vmatprep.subr.bf16.mxu0 0
  %383 = vmatpush1.bf16.msra.mxu0 %v247
  %384 = vmatprep.subr.bf16.mxu0 0
  %385 = vmatpush1.bf16.msra.mxu0 %v248
  %386 = vmatprep.subr.bf16.mxu0 0
  %387 = vmatpush1.bf16.msra.mxu0 0
  %388 = vmatprep.subr.bf16.mxu0 0
  %389 = vmatpush1.bf16.msra.mxu0 0
  %390 = vmatprep.subr.bf16.mxu0 0
  %391 = vmatpush1.bf16.msra.mxu0 0
  %392 = vmatprep.subr.bf16.mxu0 0
  %393 = vmatpush1.bf16.msra.mxu0 0
  %394 = vmatprep.subr.bf16.mxu0 0
  %395 = vmatpush1.bf16.msra.mxu0 0
  %396 = vmatprep.subr.bf16.mxu0 0
  %397 = vmatpush1.bf16.msra.mxu0 0
  %398 = vmatprep.subr.bf16.mxu0 0
  %399 = vmatpush1.bf16.msra.mxu0 0
  %400 = vmatprep.subr.bf16.mxu0 0
  %401 = vmatpush1.bf16.msra.mxu0 0
  %402 = vmatprep.mubr.bf16.mxu0 0
  %403 = vmatmul.mubr.bf16.gmra.mrb[0].mxu0 %v362
  %v404 = vpop.f32.mrb[0].mxu0
  %v405 = vadd.f32 0.0, %v404
  %v406 = vpop.f32.mrb[0].mxu0
  %v407 = vpop.f32.mrb[0].mxu0
  %v408 = vadd.f32 0.0, %v407
  %v409 = vpop.f32.mrb[0].mxu0
  %410 = vmatprep.mubr.bf16.mxu0 0
  %411 = vmatmul.mubr.bf16.gmra.mrb[0].mxu0 %v363
  %v412 = vpop.f32.mrb[0].mxu0
  %v413 = vadd.f32 0.0, %v412
  %v414 = vpop.f32.mrb[0].mxu0
  %v415 = vpop.f32.mrb[0].mxu0
  %v416 = vadd.f32 0.0, %v415
  %v417 = vpop.f32.mrb[0].mxu0
  %418 = vmatprep.mubr.bf16.mxu0 0
  %419 = vmatmul.mubr.bf16.gmra.mrb[0].mxu0 %v364
  %v420 = vpop.f32.mrb[0].mxu0
  %v421 = vadd.f32 0.0, %v420
  %v422 = vpop.f32.mrb[0].mxu0
  %v423 = vpop.f32.mrb[0].mxu0
  %v424 = vadd.f32 0.0, %v423
  %v425 = vpop.f32.mrb[0].mxu0
  %426 = vmatprep.mubr.bf16.mxu0 0
  %427 = vmatmul.mubr.bf16.gmra.mrb[0].mxu0 %v365
  %v428 = vpop.f32.mrb[0].mxu0
  %v429 = vadd.f32 0.0, %v428
  %v430 = vpop.f32.mrb[0].mxu0
  %v431 = vpop.f32.mrb[0].mxu0
  %v432 = vadd.f32 0.0, %v431
  %v433 = vpop.f32.mrb[0].mxu0
  %434 = vmatprep.mubr.bf16.mxu0 0
  %435 = vmatmul.mubr.bf16.gmra.mrb[0].mxu0 %v366
  %v436 = vpop.f32.mrb[0].mxu0
  %v437 = vadd.f32 0.0, %v436
  %v438 = vpop.f32.mrb[0].mxu0
  %v439 = vpop.f32.mrb[0].mxu0
  %v440 = vadd.f32 0.0, %v439
  %v441 = vpop.f32.mrb[0].mxu0
  %442 = vmatprep.mubr.bf16.mxu0 0
  %443 = vmatmul.mubr.bf16.gmra.mrb[0].mxu0 %v367
  %v444 = vpop.f32.mrb[0].mxu0
  %v445 = vadd.f32 0.0, %v444
  %v446 = vpop.f32.mrb[0].mxu0
  %v447 = vpop.f32.mrb[0].mxu0
  %v448 = vadd.f32 0.0, %v447
  %v449 = vpop.f32.mrb[0].mxu0
  %450 = vmatprep.mubr.bf16.mxu0 0
  %451 = vmatmul.mubr.bf16.gmra.mrb[0].mxu0 %v368
  %v452 = vpop.f32.mrb[0].mxu0
  %v453 = vadd.f32 0.0, %v452
  %v454 = vpop.f32.mrb[0].mxu0
  %v455 = vpop.f32.mrb[0].mxu0
  %v456 = vadd.f32 0.0, %v455
  %v457 = vpop.f32.mrb[0].mxu0
  %458 = vmatprep.mubr.bf16.mxu0 0
  %459 = vmatmul.mubr.bf16.gmra.mrb[0].mxu0 %v369
  %v460 = vpop.f32.mrb[0].mxu0
  %v461 = vadd.f32 0.0, %v460
  %v462 = vpop.f32.mrb[0].mxu0
  %v463 = vpop.f32.mrb[0].mxu0
  %v464 = vadd.f32 0.0, %v463
  %v465 = vpop.f32.mrb[0].mxu0
  %466 = vdwg.mxu0
  %v467 = vld [vmem:[%s2] sm:$0xff]
  %v468 = vld [vmem:[%s2 + $0x8] sm:$0xff]
  %v469 = vld [vmem:[%s2 + $0x10] sm:$0xff]
  %v470 = vld [vmem:[%s2 + $0x18] sm:$0xff]
  %v471 = vld [vmem:[%s2 + $0x20] sm:$0xff]
  %v472 = vld [vmem:[%s2 + $0x28] sm:$0xff]
  %v473 = vld [vmem:[%s2 + $0x30] sm:$0xff]
  %v474 = vld [vmem:[%s2 + $0x38] sm:$0xff]
  %v475 = vld [vmem:[%s2 + $0x40] sm:$0xff]
  %v476 = vld [vmem:[%s2 + $0x48] sm:$0xff]
  %v477 = vld [vmem:[%s2 + $0x50] sm:$0xff]
  %v478 = vld [vmem:[%s2 + $0x58] sm:$0xff]
  %v479 = vld [vmem:[%s2 + $0x60] sm:$0xff]
  %v480 = vld [vmem:[%s2 + $0x68] sm:$0xff]
  %v481 = vld [vmem:[%s2 + $0x70] sm:$0xff]
  %v482 = vld [vmem:[%s2 + $0x78] sm:$0xff]
  %v483 = vmul.f32 %v292, %v467
  %v484 = vmul.f32 %v295, %v468
  %v485 = vmul.f32 %v300, %v469
  %v486 = vmul.f32 %v303, %v470
  %v487 = vmul.f32 %v308, %v471
  %v488 = vmul.f32 %v311, %v472
  %v489 = vmul.f32 %v316, %v473
  %v490 = vmul.f32 %v319, %v474
  %v491 = vmul.f32 %v324, %v475
  %v492 = vmul.f32 %v327, %v476
  %v493 = vmul.f32 %v332, %v477
  %v494 = vmul.f32 %v335, %v478
  %v495 = vmul.f32 %v340, %v479
  %v496 = vmul.f32 %v343, %v480
  %v497 = vmul.f32 %v348, %v481
  %v498 = vmul.f32 %v351, %v482
  %v499 = vpack.c.bf16 %v484, %v483
  %v500 = vpack.c.bf16 %v486, %v485
  %v501 = vpack.c.bf16 %v488, %v487
  %v502 = vpack.c.bf16 %v490, %v489
  %v503 = vpack.c.bf16 %v492, %v491
  %v504 = vpack.c.bf16 %v494, %v493
  %v505 = vpack.c.bf16 %v496, %v495
  %v506 = vpack.c.bf16 %v498, %v497
  %v507 = vmul.f32 %v405, %v467
  %v508 = vmul.f32 %v408, %v468
  %v509 = vmul.f32 %v413, %v469
  %v510 = vmul.f32 %v416, %v470
  %v511 = vmul.f32 %v421, %v471
  %v512 = vmul.f32 %v424, %v472
  %v513 = vmul.f32 %v429, %v473
  %v514 = vmul.f32 %v432, %v474
  %v515 = vmul.f32 %v437, %v475
  %v516 = vmul.f32 %v440, %v476
  %v517 = vmul.f32 %v445, %v477
  %v518 = vmul.f32 %v448, %v478
  %v519 = vmul.f32 %v453, %v479
  %v520 = vmul.f32 %v456, %v480
  %v521 = vmul.f32 %v461, %v481
  %v522 = vmul.f32 %v464, %v482
  %v523 = vpack.c.bf16 %v508, %v507
  %v524 = vpack.c.bf16 %v510, %v509
  %v525 = vpack.c.bf16 %v512, %v511
  %v526 = vpack.c.bf16 %v514, %v513
  %v527 = vpack.c.bf16 %v516, %v515
  %v528 = vpack.c.bf16 %v518, %v517
  %v529 = vpack.c.bf16 %v520, %v519
  %v530 = vpack.c.bf16 %v522, %v521
  %v531 = vld [vmem:[%s4] sm:$0xff]
  %v532 = vld [vmem:[%s4 + $0x8] sm:$0xff]
  %v533 = vld [vmem:[%s4 + $0x10] sm:$0xff]
  %v534 = vld [vmem:[%s4 + $0x18] sm:$0xff]
  %v535 = vld [vmem:[%s4 + $0x20] sm:$0xff]
  %v536 = vld [vmem:[%s4 + $0x28] sm:$0xff]
  %v537 = vld [vmem:[%s4 + $0x30] sm:$0xff]
  %v538 = vld [vmem:[%s4 + $0x38] sm:$0xff]
  %v539 = vld [vmem:[%s4 + $0x40] sm:$0xff]
  %v540 = vld [vmem:[%s4 + $0x48] sm:$0xff]
  %v541 = vld [vmem:[%s4 + $0x50] sm:$0xff]
  %v542 = vld [vmem:[%s4 + $0x58] sm:$0xff]
  %v543 = vld [vmem:[%s4 + $0x60] sm:$0xff]
  %v544 = vld [vmem:[%s4 + $0x68] sm:$0xff]
  %v545 = vld [vmem:[%s4 + $0x70] sm:$0xff]
  %v546 = vld [vmem:[%s4 + $0x78] sm:$0xff]
  %547 = vmatprep.subr.bf16.mxu0 0
  %548 = vmatpush1.bf16.msra.mxu0 %v523
  %549 = vmatprep.subr.bf16.mxu0 0
  %550 = vmatpush1.bf16.msra.mxu0 %v524
  %551 = vmatprep.subr.bf16.mxu0 0
  %552 = vmatpush1.bf16.msra.mxu0 %v525
  %553 = vmatprep.subr.bf16.mxu0 0
  %554 = vmatpush1.bf16.msra.mxu0 %v526
  %555 = vmatprep.subr.bf16.mxu0 0
  %556 = vmatpush1.bf16.msra.mxu0 %v527
  %557 = vmatprep.subr.bf16.mxu0 0
  %558 = vmatpush1.bf16.msra.mxu0 %v528
  %559 = vmatprep.subr.bf16.mxu0 0
  %560 = vmatpush1.bf16.msra.mxu0 %v529
  %561 = vmatprep.subr.bf16.mxu0 0
  %562 = vmatpush1.bf16.msra.mxu0 %v530
  %563 = vmatprep.subr.bf16.mxu0 0
  %564 = vmatpush1.bf16.msra.mxu0 0
  %565 = vmatprep.subr.bf16.mxu0 0
  %566 = vmatpush1.bf16.msra.mxu0 0
  %567 = vmatprep.subr.bf16.mxu0 0
  %568 = vmatpush1.bf16.msra.mxu0 0
  %569 = vmatprep.subr.bf16.mxu0 0
  %570 = vmatpush1.bf16.msra.mxu0 0
  %571 = vmatprep.subr.bf16.mxu0 0
  %572 = vmatpush1.bf16.msra.mxu0 0
  %573 = vmatprep.subr.bf16.mxu0 0
  %574 = vmatpush1.bf16.msra.mxu0 0
  %575 = vmatprep.subr.bf16.mxu0 0
  %576 = vmatpush1.bf16.msra.mxu0 0
  %577 = vmatprep.subr.bf16.mxu0 0
  %578 = vmatpush1.bf16.msra.mxu0 0
  %579 = vmatprep.mubr.bf16.mxu0 0
  %580 = vmatmul.mubr.bf16.gmra.mrb[0].mxu0 %v109
  %v581 = vpop.f32.mrb[0].mxu0
  %v582 = vadd.f32 0.0, %v581
  %v583 = vpop.f32.mrb[0].mxu0
  %v584 = vpop.f32.mrb[0].mxu0
  %v585 = vadd.f32 0.0, %v584
  %v586 = vpop.f32.mrb[0].mxu0
  %587 = vmatprep.mubr.bf16.mxu0 0
  %588 = vmatmul.mubr.bf16.gmra.mrb[0].mxu0 %v110
  %v589 = vpop.f32.mrb[0].mxu0
  %v590 = vadd.f32 0.0, %v589
  %v591 = vpop.f32.mrb[0].mxu0
  %v592 = vpop.f32.mrb[0].mxu0
  %v593 = vadd.f32 0.0, %v592
  %v594 = vpop.f32.mrb[0].mxu0
  %595 = vmatprep.mubr.bf16.mxu0 0
  %596 = vmatmul.mubr.bf16.gmra.mrb[0].mxu0 %v111
  %v597 = vpop.f32.mrb[0].mxu0
  %v598 = vadd.f32 0.0, %v597
  %v599 = vpop.f32.mrb[0].mxu0
  %v600 = vpop.f32.mrb[0].mxu0
  %v601 = vadd.f32 0.0, %v600
  %v602 = vpop.f32.mrb[0].mxu0
  %603 = vmatprep.mubr.bf16.mxu0 0
  %604 = vmatmul.mubr.bf16.gmra.mrb[0].mxu0 %v112
  %v605 = vpop.f32.mrb[0].mxu0
  %v606 = vadd.f32 0.0, %v605
  %v607 = vpop.f32.mrb[0].mxu0
  %v608 = vpop.f32.mrb[0].mxu0
  %v609 = vadd.f32 0.0, %v608
  %v610 = vpop.f32.mrb[0].mxu0
  %611 = vmatprep.mubr.bf16.mxu0 0
  %612 = vmatmul.mubr.bf16.gmra.mrb[0].mxu0 %v113
  %v613 = vpop.f32.mrb[0].mxu0
  %v614 = vadd.f32 0.0, %v613
  %v615 = vpop.f32.mrb[0].mxu0
  %v616 = vpop.f32.mrb[0].mxu0
  %v617 = vadd.f32 0.0, %v616
  %v618 = vpop.f32.mrb[0].mxu0
  %619 = vmatprep.mubr.bf16.mxu0 0
  %620 = vmatmul.mubr.bf16.gmra.mrb[0].mxu0 %v114
  %v621 = vpop.f32.mrb[0].mxu0
  %v622 = vadd.f32 0.0, %v621
  %v623 = vpop.f32.mrb[0].mxu0
  %v624 = vpop.f32.mrb[0].mxu0
  %v625 = vadd.f32 0.0, %v624
  %v626 = vpop.f32.mrb[0].mxu0
  %627 = vmatprep.mubr.bf16.mxu0 0
  %628 = vmatmul.mubr.bf16.gmra.mrb[0].mxu0 %v115
  %v629 = vpop.f32.mrb[0].mxu0
  %v630 = vadd.f32 0.0, %v629
  %v631 = vpop.f32.mrb[0].mxu0
  %v632 = vpop.f32.mrb[0].mxu0
  %v633 = vadd.f32 0.0, %v632
  %v634 = vpop.f32.mrb[0].mxu0
  %635 = vmatprep.mubr.bf16.mxu0 0
  %636 = vmatmul.mubr.bf16.gmra.mrb[0].mxu0 %v116
  %v637 = vpop.f32.mrb[0].mxu0
  %v638 = vadd.f32 0.0, %v637
  %v639 = vpop.f32.mrb[0].mxu0
  %v640 = vpop.f32.mrb[0].mxu0
  %v641 = vadd.f32 0.0, %v640
  %v642 = vpop.f32.mrb[0].mxu0
  %643 = vdwg.mxu0
  %644 = vmatprep.subr.bf16.mxu0 0
  %645 = vmatpush1.bf16.msra.mxu0 %v499
  %646 = vmatprep.subr.bf16.mxu0 0
  %647 = vmatpush1.bf16.msra.mxu0 %v500
  %648 = vmatprep.subr.bf16.mxu0 0
  %649 = vmatpush1.bf16.msra.mxu0 %v501
  %650 = vmatprep.subr.bf16.mxu0 0
  %651 = vmatpush1.bf16.msra.mxu0 %v502
  %652 = vmatprep.subr.bf16.mxu0 0
  %653 = vmatpush1.bf16.msra.mxu0 %v503
  %654 = vmatprep.subr.bf16.mxu0 0
  %655 = vmatpush1.bf16.msra.mxu0 %v504
  %656 = vmatprep.subr.bf16.mxu0 0
  %657 = vmatpush1.bf16.msra.mxu0 %v505
  %658 = vmatprep.subr.bf16.mxu0 0
  %659 = vmatpush1.bf16.msra.mxu0 %v506
  %660 = vmatprep.subr.bf16.mxu0 0
  %661 = vmatpush1.bf16.msra.mxu0 0
  %662 = vmatprep.subr.bf16.mxu0 0
  %663 = vmatpush1.bf16.msra.mxu0 0
  %664 = vmatprep.subr.bf16.mxu0 0
  %665 = vmatpush1.bf16.msra.mxu0 0
  %666 = vmatprep.subr.bf16.mxu0 0
  %667 = vmatpush1.bf16.msra.mxu0 0
  %668 = vmatprep.subr.bf16.mxu0 0
  %669 = vmatpush1.bf16.msra.mxu0 0
  %670 = vmatprep.subr.bf16.mxu0 0
  %671 = vmatpush1.bf16.msra.mxu0 0
  %672 = vmatprep.subr.bf16.mxu0 0
  %673 = vmatpush1.bf16.msra.mxu0 0
  %674 = vmatprep.subr.bf16.mxu0 0
  %675 = vmatpush1.bf16.msra.mxu0 0
  %676 = vmatprep.mubr.bf16.mxu0 0
  %677 = vmatmul.mubr.bf16.gmra.mrb[0].mxu0 %v169
  %v678 = vpop.f32.mrb[0].mxu0
  %v679 = vadd.f32 %v582, %v678
  %v680 = vpop.f32.mrb[0].mxu0
  %v681 = vpop.f32.mrb[0].mxu0
  %v682 = vadd.f32 %v585, %v681
  %v683 = vpop.f32.mrb[0].mxu0
  %684 = vmatprep.mubr.bf16.mxu0 0
  %685 = vmatmul.mubr.bf16.gmra.mrb[0].mxu0 %v170
  %v686 = vpop.f32.mrb[0].mxu0
  %v687 = vadd.f32 %v590, %v686
  %v688 = vpop.f32.mrb[0].mxu0
  %v689 = vpop.f32.mrb[0].mxu0
  %v690 = vadd.f32 %v593, %v689
  %v691 = vpop.f32.mrb[0].mxu0
  %692 = vmatprep.mubr.bf16.mxu0 0
  %693 = vmatmul.mubr.bf16.gmra.mrb[0].mxu0 %v171
  %v694 = vpop.f32.mrb[0].mxu0
  %v695 = vadd.f32 %v598, %v694
  %v696 = vpop.f32.mrb[0].mxu0
  %v697 = vpop.f32.mrb[0].mxu0
  %v698 = vadd.f32 %v601, %v697
  %v699 = vpop.f32.mrb[0].mxu0
  %700 = vmatprep.mubr.bf16.mxu0 0
  %701 = vmatmul.mubr.bf16.gmra.mrb[0].mxu0 %v172
  %v702 = vpop.f32.mrb[0].mxu0
  %v703 = vadd.f32 %v606, %v702
  %v704 = vpop.f32.mrb[0].mxu0
  %v705 = vpop.f32.mrb[0].mxu0
  %v706 = vadd.f32 %v609, %v705
  %v707 = vpop.f32.mrb[0].mxu0
  %708 = vmatprep.mubr.bf16.mxu0 0
  %709 = vmatmul.mubr.bf16.gmra.mrb[0].mxu0 %v173
  %v710 = vpop.f32.mrb[0].mxu0
  %v711 = vadd.f32 %v614, %v710
  %v712 = vpop.f32.mrb[0].mxu0
  %v713 = vpop.f32.mrb[0].mxu0
  %v714 = vadd.f32 %v617, %v713
  %v715 = vpop.f32.mrb[0].mxu0
  %716 = vmatprep.mubr.bf16.mxu0 0
  %717 = vmatmul.mubr.bf16.gmra.mrb[0].mxu0 %v174
  %v718 = vpop.f32.mrb[0].mxu0
  %v719 = vadd.f32 %v622, %v718
  %v720 = vpop.f32.mrb[0].mxu0
  %v721 = vpop.f32.mrb[0].mxu0
  %v722 = vadd.f32 %v625, %v721
  %v723 = vpop.f32.mrb[0].mxu0
  %724 = vmatprep.mubr.bf16.mxu0 0
  %725 = vmatmul.mubr.bf16.gmra.mrb[0].mxu0 %v175
  %v726 = vpop.f32.mrb[0].mxu0
  %v727 = vadd.f32 %v630, %v726
  %v728 = vpop.f32.mrb[0].mxu0
  %v729 = vpop.f32.mrb[0].mxu0
  %v730 = vadd.f32 %v633, %v729
  %v731 = vpop.f32.mrb[0].mxu0
  %732 = vmatprep.mubr.bf16.mxu0 0
  %733 = vmatmul.mubr.bf16.gmra.mrb[0].mxu0 %v176
  %v734 = vpop.f32.mrb[0].mxu0
  %v735 = vadd.f32 %v638, %v734
  %v736 = vpop.f32.mrb[0].mxu0
  %v737 = vpop.f32.mrb[0].mxu0
  %v738 = vadd.f32 %v641, %v737
  %v739 = vpop.f32.mrb[0].mxu0
  %740 = vdwg.mxu0
  %v741 = vadd.f32 %v531, %v679
  %v742 = vadd.f32 %v532, %v682
  %v743 = vadd.f32 %v533, %v687
  %v744 = vadd.f32 %v534, %v690
  %v745 = vadd.f32 %v535, %v695
  %v746 = vadd.f32 %v536, %v698
  %v747 = vadd.f32 %v537, %v703
  %v748 = vadd.f32 %v538, %v706
  %v749 = vadd.f32 %v539, %v711
  %v750 = vadd.f32 %v540, %v714
  %v751 = vadd.f32 %v541, %v719
  %v752 = vadd.f32 %v542, %v722
  %v753 = vadd.f32 %v543, %v727
  %v754 = vadd.f32 %v544, %v730
  %v755 = vadd.f32 %v545, %v735
  %v756 = vadd.f32 %v546, %v738
  %757 = vst [vmem:[%s4] sm:$0xff] %v741
  %758 = vst [vmem:[%s4 + $0x8] sm:$0xff] %v742
  %759 = vst [vmem:[%s4 + $0x10] sm:$0xff] %v743
  %760 = vst [vmem:[%s4 + $0x18] sm:$0xff] %v744
  %761 = vst [vmem:[%s4 + $0x20] sm:$0xff] %v745
  %762 = vst [vmem:[%s4 + $0x28] sm:$0xff] %v746
  %763 = vst [vmem:[%s4 + $0x30] sm:$0xff] %v747
  %764 = vst [vmem:[%s4 + $0x38] sm:$0xff] %v748
  %765 = vst [vmem:[%s4 + $0x40] sm:$0xff] %v749
  %766 = vst [vmem:[%s4 + $0x48] sm:$0xff] %v750
  %767 = vst [vmem:[%s4 + $0x50] sm:$0xff] %v751
  %768 = vst [vmem:[%s4 + $0x58] sm:$0xff] %v752
  %769 = vst [vmem:[%s4 + $0x60] sm:$0xff] %v753
  %770 = vst [vmem:[%s4 + $0x68] sm:$0xff] %v754
  %771 = vst [vmem:[%s4 + $0x70] sm:$0xff] %v755
  %772 = vst [vmem:[%s4 + $0x78] sm:$0xff] %v756
  // Predicated region
  $region22: #{message_passing.1} parent=0 // pred_check
    _
  $region23: #{message_passing.1} parent=0 // pred_check_branch
    %774 = sbr.rel (0) target = $region25
  $region24: #{message_passing.1} parent=0 // pred_region
    _
  $region25: #{message_passing.1} parent=0 // pred_fallthru
    _
  // Predicated region
  $region26: #{message_passing.1} parent=0 // pred_check
    _
  $region27: #{message_passing.1} parent=0 // pred_check_branch
    %776 = sbr.rel (0) target = $region29
  $region28: #{message_passing.1} parent=0 // pred_region
    _
  $region29: #{message_passing.1} parent=0 // pred_fallthru
    _

</llo_original>
